<compile_context>
chip_gen: v7x
topology: tpu7x:2x2x1
jax: 0.10.0
libtpu: 0.0.40
codegen_flags: <defaults>
</compile_context>

<pallas_src>
import functools

import jax
import jax.numpy as jnp
from jax import lax
from jax.experimental import pallas as pl
from jax.experimental.pallas import tpu as pltpu

INPUT_SIZE = 2
HIDDEN_SIZE = 32
OUTPUT_SIZE = 2
SUBLANE = 8
TILE_T_MAX = 512   # time block: 2x(xs + h) double-buffered blocks ~= 1 MiB VMEM


def _round_up(x, m):
    return ((x + m - 1) // m) * m


def _rnn_seq_kernel(t_actual, tile_t,
                    xs_ref, h0_ref, wih_t_ref, whh_t_ref, b_rnn_ref,
                    h_out_ref, h_final_ref,
                    h_carry):
    """One time-block of the fused RNNCell recurrence.

    xs_ref      : (tile_t, INPUT_SIZE)          x rows for this time block
    h0_ref      : (1, HIDDEN_SIZE)              initial hidden state (resident)
    wih_t_ref   : (INPUT_SIZE, HIDDEN_SIZE)     W_ih^T (resident)
    whh_t_ref   : (HIDDEN_SIZE, HIDDEN_SIZE)    W_hh^T (resident)
    b_rnn_ref   : (1, HIDDEN_SIZE)              b_ih + b_hh (fused, resident)
    h_out_ref   : (tile_t, HIDDEN_SIZE)         per-step hidden states h_t
    h_final_ref : (1, HIDDEN_SIZE)              h after step t_actual-1 (resident)
    h_carry     : (1, HIDDEN_SIZE) VMEM scratch hidden state carried across blocks
    """
    i = pl.program_id(0)
    t_base = i * tile_t

    @pl.when(i == 0)
    def _():
        h_carry[...] = h0_ref[...]

    # (1) Non-recurrent input projection for the whole block, on the VPU:
    #     pre[t] = x_t @ W_ih^T + (b_ih + b_hh)   as rank-1 updates (K = 2).
    pre = jnp.broadcast_to(b_rnn_ref[...], (tile_t, HIDDEN_SIZE))
    for k in range(INPUT_SIZE):
        pre = pre + xs_ref[:, k:k + 1] * wih_t_ref[k:k + 1, :]
    h_out_ref[...] = pre

    # (2) Sequential recurrence — the only genuinely serial part.
    whh = whh_t_ref[...]                     # hoisted out of the loop
    n_chunks = tile_t // SUBLANE             # static

    def chunk(c, h):
        row0 = pl.multiple_of(c * SUBLANE, SUBLANE)
        pre8 = h_out_ref[pl.ds(row0, SUBLANE), :]        # one aligned 8-row load
        hs = []
        for j in range(SUBLANE):                         # unroll-by-8
            z = pre8[j:j + 1, :] + jnp.dot(
                h, whh, preferred_element_type=jnp.float32)
            h_new = jnp.tanh(z)
            # Freeze h past the true sequence end (padded timesteps).
            h = jnp.where(t_base + row0 + j < t_actual, h_new, h)
            hs.append(h)
        # one aligned 8-row store of the computed hidden states
        h_out_ref[pl.ds(row0, SUBLANE), :] = jnp.concatenate(hs, axis=0)
        return h

    unroll = True if n_chunks <= 4 else 2
    h_last = lax.fori_loop(0, n_chunks, chunk, h_carry[...], unroll=unroll)

    h_carry[...] = h_last
    h_final_ref[...] = h_last


def rnn_sequence_forward(params, xs, h0, *, tile_t_max=TILE_T_MAX):
    """Run the RNNModel forward over a whole sequence.

    xs: (T, input_size) float32   h0: (hidden_size,) float32
    returns (outputs (T, 2), hidden_final (hidden_size,));
    outputs[t] == RNNModel.forward(xs[t], h_{t-1})[0].view(-1, 2).
    """
    xs = jnp.asarray(xs, jnp.float32)
    h0 = jnp.asarray(h0, jnp.float32)
    t_actual = int(xs.shape[0])

    # time tiling: pad T to a sublane multiple, then to a whole number of blocks
    t_pad8 = max(SUBLANE, _round_up(max(t_actual, 1), SUBLANE))
    tile_t = min(_round_up(tile_t_max, SUBLANE), t_pad8)
    num_blocks = -(-t_pad8 // tile_t)
    t_pad = num_blocks * tile_t

    w_ih, w_hh = params["w_ih"], params["w_hh"]
    b_ih, b_hh = params["b_ih"], params["b_hh"]
    w_fc, b_fc = params["w_fc"], params["b_fc"]

    # wrapper-side packing (plain JAX glue, not the hot path)
    xs_pad = jnp.zeros((t_pad, INPUT_SIZE), jnp.float32).at[:t_actual].set(xs)
    h0_2d = h0.reshape(1, HIDDEN_SIZE)
    wih_t = w_ih.T.astype(jnp.float32)                       # (IN, HID)
    whh_t = w_hh.T.astype(jnp.float32)                       # (HID, HID)
    b_rnn = (b_ih + b_hh).reshape(1, HIDDEN_SIZE).astype(jnp.float32)

    const = lambda shape: pl.BlockSpec(shape, lambda i: tuple(0 for _ in shape))

    h_all, h_final = pl.pallas_call(
        functools.partial(_rnn_seq_kernel, t_actual, tile_t),
        out_shape=(
            jax.ShapeDtypeStruct((t_pad, HIDDEN_SIZE), jnp.float32),
            jax.ShapeDtypeStruct((1, HIDDEN_SIZE), jnp.float32),
        ),
        grid=(num_blocks,),
        in_specs=[
            pl.BlockSpec((tile_t, INPUT_SIZE), lambda i: (i, 0)),   # xs (streamed)
            const((1, HIDDEN_SIZE)),                                # h0
            const((INPUT_SIZE, HIDDEN_SIZE)),                       # W_ih^T
            const((HIDDEN_SIZE, HIDDEN_SIZE)),                      # W_hh^T
            const((1, HIDDEN_SIZE)),                                # b_ih + b_hh
        ],
        out_specs=(
            pl.BlockSpec((tile_t, HIDDEN_SIZE), lambda i: (i, 0)),  # h_t (streamed)
            const((1, HIDDEN_SIZE)),                                # final h
        ),
        scratch_shapes=[pltpu.VMEM((1, HIDDEN_SIZE), jnp.float32)], # h carry
        compiler_params=pltpu.CompilerParams(
            dimension_semantics=("arbitrary",)),                    # time is serial
    )(xs_pad, h0_2d, wih_t, whh_t, b_rnn)

    # 2-wide FC head as XLA epilogue (avoids padding the kernel output to 128
    # lanes — 4-64x fewer HBM writeback bytes per the review).
    h_states = h_all[:t_actual]                                     # (T, HID)
    outputs = h_states @ w_fc.T.astype(jnp.float32) + b_fc.astype(jnp.float32)
    return outputs, h_final.reshape(HIDDEN_SIZE)


def rnn_model_forward(params, x, hidden):
    """Per-step API matching RNNModel.forward(x, hidden).

    Kept for API parity only — in any hot loop route through
    rnn_sequence_forward (one kernel launch per step is pure overhead).
    """
    outs, h_new = rnn_sequence_forward(
        params, jnp.asarray(x, jnp.float32).reshape(1, INPUT_SIZE), hidden)
    return outs.reshape(-1, OUTPUT_SIZE), h_new


def init_params(key):
    """Deterministic init mirroring PyTorch's RNNCell / Linear shapes."""
    k = 1.0 / jnp.sqrt(jnp.float32(HIDDEN_SIZE))
    keys = jax.random.split(key, 6)
    u = lambda kk, shape, bound: jax.random.uniform(
        kk, shape, jnp.float32, -bound, bound)
    return {
        "w_ih": u(keys[0], (HIDDEN_SIZE, INPUT_SIZE), k),
        "w_hh": u(keys[1], (HIDDEN_SIZE, HIDDEN_SIZE), k),
        "b_ih": u(keys[2], (HIDDEN_SIZE,), k),
        "b_hh": u(keys[3], (HIDDEN_SIZE,), k),
        "w_fc": u(keys[4], (OUTPUT_SIZE, HIDDEN_SIZE), k),
        "b_fc": u(keys[5], (OUTPUT_SIZE,), k),
    }


def _reference_sequence(params, xs, h0):
    """Pure-JAX reference: per-step PyTorch RNNCell + Linear, scanned over time."""
    def step(h, x):
        h_new = jnp.tanh(x @ params["w_ih"].T + params["b_ih"]
                         + h @ params["w_hh"].T + params["b_hh"])
        out = h_new @ params["w_fc"].T + params["b_fc"]
        return h_new, out
    h_final, outs = lax.scan(step, h0, xs)
    return outs, h_final


if __name__ == "__main__":
    key = jax.random.PRNGKey(0)
    pkey, xkey, xkey2 = jax.random.split(key, 3)
    params = init_params(pkey)

    # --- spec-sized test: one sequence of T=8 timesteps (single time block) ---
    T = 8
    xs = jax.random.normal(xkey, (T, INPUT_SIZE), jnp.float32)
    h0 = jnp.zeros((HIDDEN_SIZE,), jnp.float32)

    outs, hT = rnn_sequence_forward(params, xs, h0)
    outs, hT = jax.block_until_ready((outs, hT))

    ref_outs, ref_hT = _reference_sequence(params, xs, h0)
    assert outs.shape == (T, OUTPUT_SIZE)
    assert hT.shape == (HIDDEN_SIZE,)
    assert jnp.allclose(outs, ref_outs, atol=1e-5, rtol=1e-5)
    assert jnp.allclose(hT, ref_hT, atol=1e-5, rtol=1e-5)

    # --- multi-block test: T=100 with a small time tile (grid=2, h carried
    #     across blocks, padded tail masked) ---
    T2 = 100
    xs2 = jax.random.normal(xkey2, (T2, INPUT_SIZE), jnp.float32)
    outs2, hT2 = rnn_sequence_forward(params, xs2, h0, tile_t_max=64)
    outs2, hT2 = jax.block_until_ready((outs2, hT2))
    ref_outs2, ref_hT2 = _reference_sequence(params, xs2, h0)
    assert outs2.shape == (T2, OUTPUT_SIZE)
    assert jnp.allclose(outs2, ref_outs2, atol=1e-4, rtol=1e-4)
    assert jnp.allclose(hT2, ref_hT2, atol=1e-4, rtol=1e-4)

    # --- per-step API (matches RNNModel.forward signature) checked for one step ---
    out0, h1 = rnn_model_forward(params, xs[0], h0)
    out0, h1 = jax.block_until_ready((out0, h1))
    ref_h1 = jnp.tanh(xs[0] @ params["w_ih"].T + params["b_ih"]
                      + h0 @ params["w_hh"].T + params["b_hh"])
    assert out0.shape == (1, OUTPUT_SIZE)
    assert jnp.allclose(out0, ref_outs[0].reshape(-1, OUTPUT_SIZE),
                        atol=1e-5, rtol=1e-5)
    assert jnp.allclose(h1, ref_h1, atol=1e-5, rtol=1e-5)

    print("KERNEL_OK")
</pallas_src>

<mosaic_0001>
module attributes {stable_mosaic.version = 11 : i64} {
  func.func @_rnn_seq_kernel(%arg0: i32, %arg1: memref<8x2xf32, #tpu.memory_space<vmem>>, %arg2: memref<1x32xf32, #tpu.memory_space<vmem>>, %arg3: memref<2x32xf32, #tpu.memory_space<vmem>>, %arg4: memref<32x32xf32, #tpu.memory_space<vmem>>, %arg5: memref<1x32xf32, #tpu.memory_space<vmem>>, %arg6: memref<8x32xf32, #tpu.memory_space<vmem>>, %arg7: memref<1x32xf32, #tpu.memory_space<vmem>>, %arg8: memref<1x32xf32, #tpu.memory_space<vmem>>) attributes {dimension_semantics = [#tpu.dimension_semantics<arbitrary>], iteration_bounds = array<i64: 1>, scalar_prefetch = 0 : i64, scratch_operands = 1 : i64, tpu.core_type = #tpu.core_type<tc>, window_params = [{transform_indices = @transform_0, window_bounds = array<i64: 8, 2>}, {pipeline_mode = #tpu.pipeline_mode<synchronous>, transform_indices = @transform_1, window_bounds = array<i64: 1, 32>}, {pipeline_mode = #tpu.pipeline_mode<synchronous>, transform_indices = @transform_2, window_bounds = array<i64: 2, 32>}, {pipeline_mode = #tpu.pipeline_mode<synchronous>, transform_indices = @transform_3, window_bounds = array<i64: 32, 32>}, {pipeline_mode = #tpu.pipeline_mode<synchronous>, transform_indices = @transform_4, window_bounds = array<i64: 1, 32>}, {transform_indices = @transform_5, window_bounds = array<i64: 8, 32>}, {pipeline_mode = #tpu.pipeline_mode<synchronous>, transform_indices = @transform_6, window_bounds = array<i64: 1, 32>}]} {
    %c8_i32 = arith.constant 8 : i32
    %0 = arith.muli %arg0, %c8_i32 : i32
    %c0_i32 = arith.constant 0 : i32
    %1 = arith.cmpi eq, %arg0, %c0_i32 : i32
    %2 = arith.extui %1 : i1 to i32
    %c0_i32_0 = arith.constant 0 : i32
    %3 = arith.cmpi ne, %2, %c0_i32_0 : i32
    scf.if %3 {
      %c0_40 = arith.constant 0 : index
      %c0_41 = arith.constant 0 : index
      %95 = vector.load %arg2[%c0_40, %c0_41] : memref<1x32xf32, #tpu.memory_space<vmem>>, vector<1x32xf32>
      %c0_42 = arith.constant 0 : index
      %c0_43 = arith.constant 0 : index
      %96 = vector.load %arg8[%c0_42, %c0_43] : memref<1x32xf32, #tpu.memory_space<vmem>>, vector<1x32xf32>
      tpu.vector_store %arg8[%c0_42, %c0_43], %95 {strides = array<i32>} : memref<1x32xf32, #tpu.memory_space<vmem>>, vector<1x32xf32>,
    } else {
    }
    %c0 = arith.constant 0 : index
    %c0_1 = arith.constant 0 : index
    %4 = vector.load %arg5[%c0, %c0_1] : memref<1x32xf32, #tpu.memory_space<vmem>>, vector<1x32xf32>
    %5 = vector.shape_cast %4 : vector<1x32xf32> to vector<1x32xf32>
    %6 = vector.broadcast %5 : vector<1x32xf32> to vector<8x32xf32>
    %c0_2 = arith.constant 0 : index
    %c0_3 = arith.constant 0 : index
    %7 = vector.load %arg1[%c0_2, %c0_3] : memref<8x2xf32, #tpu.memory_space<vmem>>, vector<8x1xf32>
    %c0_4 = arith.constant 0 : index
    %c0_5 = arith.constant 0 : index
    %8 = vector.load %arg3[%c0_4, %c0_5] : memref<2x32xf32, #tpu.memory_space<vmem>>, vector<1x32xf32>
    %9 = vector.broadcast %7 : vector<8x1xf32> to vector<8x32xf32>
    %10 = vector.broadcast %8 : vector<1x32xf32> to vector<8x32xf32>
    %11 = arith.mulf %9, %10 : vector<8x32xf32>
    %12 = arith.addf %6, %11 : vector<8x32xf32>
    %c0_6 = arith.constant 0 : index
    %c1 = arith.constant 1 : index
    %13 = vector.load %arg1[%c0_6, %c1] : memref<8x2xf32, #tpu.memory_space<vmem>>, vector<8x1xf32>
    %c1_7 = arith.constant 1 : index
    %c0_8 = arith.constant 0 : index
    %14 = vector.load %arg3[%c1_7, %c0_8] : memref<2x32xf32, #tpu.memory_space<vmem>>, vector<1x32xf32>
    %15 = vector.broadcast %13 : vector<8x1xf32> to vector<8x32xf32>
    %16 = vector.broadcast %14 : vector<1x32xf32> to vector<8x32xf32>
    %17 = arith.mulf %15, %16 : vector<8x32xf32>
    %18 = arith.addf %12, %17 : vector<8x32xf32>
    %c0_9 = arith.constant 0 : index
    %c0_10 = arith.constant 0 : index
    %19 = vector.load %arg6[%c0_9, %c0_10] : memref<8x32xf32, #tpu.memory_space<vmem>>, vector<8x32xf32>
    tpu.vector_store %arg6[%c0_9, %c0_10], %18 {strides = array<i32>} : memref<8x32xf32, #tpu.memory_space<vmem>>, vector<8x32xf32>,
    %c0_11 = arith.constant 0 : index
    %c0_12 = arith.constant 0 : index
    %20 = vector.load %arg4[%c0_11, %c0_12] : memref<32x32xf32, #tpu.memory_space<vmem>>, vector<32x32xf32>
    %c0_13 = arith.constant 0 : index
    %c0_14 = arith.constant 0 : index
    %21 = vector.load %arg8[%c0_13, %c0_14] : memref<1x32xf32, #tpu.memory_space<vmem>>, vector<1x32xf32>
    %c0_i32_15 = arith.constant 0 : i32
    %c8_i32_16 = arith.constant 8 : i32
    %22 = arith.muli %c0_i32_15, %c8_i32_16 : i32
    %23 = tpu.assume_multiple %22, 8 : i32
    %24 = arith.index_cast %23 : i32 to index
    %c0_17 = arith.constant 0 : index
    %25 = vector.load %arg6[%24, %c0_17] : memref<8x32xf32, #tpu.memory_space<vmem>>, vector<8x32xf32>
    %26 = vector.extract_strided_slice %25 {offsets = [0, 0], sizes = [1, 32], strides = [1, 1]} : vector<8x32xf32> to vector<1x32xf32>
    %cst = arith.constant dense<0.000000e+00> : vector<1x32xf32>
    %27 = tpu.matmul %21, %20, %cst {dimension_numbers = #tpu.dot_dimension_numbers<[1], [0], [0], [1], [0, 0, 1, 1], [], []>} : vector<1x32xf32>, vector<32x32xf32>, vector<1x32xf32> -> vector<1x32xf32>
    %28 = arith.addf %26, %27 : vector<1x32xf32>
    %29 = math.tanh %28 : vector<1x32xf32>
    %30 = arith.addi %0, %23 : i32
    %c0_i32_18 = arith.constant 0 : i32
    %31 = arith.addi %30, %c0_i32_18 : i32
    %c8_i32_19 = arith.constant 8 : i32
    %32 = arith.cmpi slt, %31, %c8_i32_19 : i32
    %33 = arith.select %32, %29, %21 : vector<1x32xf32>
    %34 = vector.extract_strided_slice %25 {offsets = [1, 0], sizes = [1, 32], strides = [1, 1]} : vector<8x32xf32> to vector<1x32xf32>
    %cst_20 = arith.constant dense<0.000000e+00> : vector<1x32xf32>
    %35 = tpu.matmul %33, %20, %cst_20 {dimension_numbers = #tpu.dot_dimension_numbers<[1], [0], [0], [1], [0, 0, 1, 1], [], []>} : vector<1x32xf32>, vector<32x32xf32>, vector<1x32xf32> -> vector<1x32xf32>
    %36 = arith.addf %34, %35 : vector<1x32xf32>
    %37 = math.tanh %36 : vector<1x32xf32>
    %38 = arith.addi %0, %23 : i32
    %c1_i32 = arith.constant 1 : i32
    %39 = arith.addi %38, %c1_i32 : i32
    %c8_i32_21 = arith.constant 8 : i32
    %40 = arith.cmpi slt, %39, %c8_i32_21 : i32
    %41 = arith.select %40, %37, %33 : vector<1x32xf32>
    %42 = vector.extract_strided_slice %25 {offsets = [2, 0], sizes = [1, 32], strides = [1, 1]} : vector<8x32xf32> to vector<1x32xf32>
    %cst_22 = arith.constant dense<0.000000e+00> : vector<1x32xf32>
    %43 = tpu.matmul %41, %20, %cst_22 {dimension_numbers = #tpu.dot_dimension_numbers<[1], [0], [0], [1], [0, 0, 1, 1], [], []>} : vector<1x32xf32>, vector<32x32xf32>, vector<1x32xf32> -> vector<1x32xf32>
    %44 = arith.addf %42, %43 : vector<1x32xf32>
    %45 = math.tanh %44 : vector<1x32xf32>
    %46 = arith.addi %0, %23 : i32
    %c2_i32 = arith.constant 2 : i32
    %47 = arith.addi %46, %c2_i32 : i32
    %c8_i32_23 = arith.constant 8 : i32
    %48 = arith.cmpi slt, %47, %c8_i32_23 : i32
    %49 = arith.select %48, %45, %41 : vector<1x32xf32>
    %50 = vector.extract_strided_slice %25 {offsets = [3, 0], sizes = [1, 32], strides = [1, 1]} : vector<8x32xf32> to vector<1x32xf32>
    %cst_24 = arith.constant dense<0.000000e+00> : vector<1x32xf32>
    %51 = tpu.matmul %49, %20, %cst_24 {dimension_numbers = #tpu.dot_dimension_numbers<[1], [0], [0], [1], [0, 0, 1, 1], [], []>} : vector<1x32xf32>, vector<32x32xf32>, vector<1x32xf32> -> vector<1x32xf32>
    %52 = arith.addf %50, %51 : vector<1x32xf32>
    %53 = math.tanh %52 : vector<1x32xf32>
    %54 = arith.addi %0, %23 : i32
    %c3_i32 = arith.constant 3 : i32
    %55 = arith.addi %54, %c3_i32 : i32
    %c8_i32_25 = arith.constant 8 : i32
    %56 = arith.cmpi slt, %55, %c8_i32_25 : i32
    %57 = arith.select %56, %53, %49 : vector<1x32xf32>
    %58 = vector.extract_strided_slice %25 {offsets = [4, 0], sizes = [1, 32], strides = [1, 1]} : vector<8x32xf32> to vector<1x32xf32>
    %cst_26 = arith.constant dense<0.000000e+00> : vector<1x32xf32>
    %59 = tpu.matmul %57, %20, %cst_26 {dimension_numbers = #tpu.dot_dimension_numbers<[1], [0], [0], [1], [0, 0, 1, 1], [], []>} : vector<1x32xf32>, vector<32x32xf32>, vector<1x32xf32> -> vector<1x32xf32>
    %60 = arith.addf %58, %59 : vector<1x32xf32>
    %61 = math.tanh %60 : vector<1x32xf32>
    %62 = arith.addi %0, %23 : i32
    %c4_i32 = arith.constant 4 : i32
    %63 = arith.addi %62, %c4_i32 : i32
    %c8_i32_27 = arith.constant 8 : i32
    %64 = arith.cmpi slt, %63, %c8_i32_27 : i32
    %65 = arith.select %64, %61, %57 : vector<1x32xf32>
    %66 = vector.extract_strided_slice %25 {offsets = [5, 0], sizes = [1, 32], strides = [1, 1]} : vector<8x32xf32> to vector<1x32xf32>
    %cst_28 = arith.constant dense<0.000000e+00> : vector<1x32xf32>
    %67 = tpu.matmul %65, %20, %cst_28 {dimension_numbers = #tpu.dot_dimension_numbers<[1], [0], [0], [1], [0, 0, 1, 1], [], []>} : vector<1x32xf32>, vector<32x32xf32>, vector<1x32xf32> -> vector<1x32xf32>
    %68 = arith.addf %66, %67 : vector<1x32xf32>
    %69 = math.tanh %68 : vector<1x32xf32>
    %70 = arith.addi %0, %23 : i32
    %c5_i32 = arith.constant 5 : i32
    %71 = arith.addi %70, %c5_i32 : i32
    %c8_i32_29 = arith.constant 8 : i32
    %72 = arith.cmpi slt, %71, %c8_i32_29 : i32
    %73 = arith.select %72, %69, %65 : vector<1x32xf32>
    %74 = vector.extract_strided_slice %25 {offsets = [6, 0], sizes = [1, 32], strides = [1, 1]} : vector<8x32xf32> to vector<1x32xf32>
    %cst_30 = arith.constant dense<0.000000e+00> : vector<1x32xf32>
    %75 = tpu.matmul %73, %20, %cst_30 {dimension_numbers = #tpu.dot_dimension_numbers<[1], [0], [0], [1], [0, 0, 1, 1], [], []>} : vector<1x32xf32>, vector<32x32xf32>, vector<1x32xf32> -> vector<1x32xf32>
    %76 = arith.addf %74, %75 : vector<1x32xf32>
    %77 = math.tanh %76 : vector<1x32xf32>
    %78 = arith.addi %0, %23 : i32
    %c6_i32 = arith.constant 6 : i32
    %79 = arith.addi %78, %c6_i32 : i32
    %c8_i32_31 = arith.constant 8 : i32
    %80 = arith.cmpi slt, %79, %c8_i32_31 : i32
    %81 = arith.select %80, %77, %73 : vector<1x32xf32>
    %82 = vector.extract_strided_slice %25 {offsets = [7, 0], sizes = [1, 32], strides = [1, 1]} : vector<8x32xf32> to vector<1x32xf32>
    %cst_32 = arith.constant dense<0.000000e+00> : vector<1x32xf32>
    %83 = tpu.matmul %81, %20, %cst_32 {dimension_numbers = #tpu.dot_dimension_numbers<[1], [0], [0], [1], [0, 0, 1, 1], [], []>} : vector<1x32xf32>, vector<32x32xf32>, vector<1x32xf32> -> vector<1x32xf32>
    %84 = arith.addf %82, %83 : vector<1x32xf32>
    %85 = math.tanh %84 : vector<1x32xf32>
    %86 = arith.addi %0, %23 : i32
    %c7_i32 = arith.constant 7 : i32
    %87 = arith.addi %86, %c7_i32 : i32
    %c8_i32_33 = arith.constant 8 : i32
    %88 = arith.cmpi slt, %87, %c8_i32_33 : i32
    %89 = arith.select %88, %85, %81 : vector<1x32xf32>
    %90 = tpu.concatenate %33, %41, %49, %57, %65, %73, %81, %89 in 0 : vector<1x32xf32>, vector<1x32xf32>, vector<1x32xf32>, vector<1x32xf32>, vector<1x32xf32>, vector<1x32xf32>, vector<1x32xf32>, vector<1x32xf32> -> vector<8x32xf32>
    %91 = arith.index_cast %23 : i32 to index
    %c0_34 = arith.constant 0 : index
    %92 = vector.load %arg6[%91, %c0_34] : memref<8x32xf32, #tpu.memory_space<vmem>>, vector<8x32xf32>
    tpu.vector_store %arg6[%91, %c0_34], %90 {strides = array<i32>} : memref<8x32xf32, #tpu.memory_space<vmem>>, vector<8x32xf32>,
    %c1_i32_35 = arith.constant 1 : i32
    %c0_36 = arith.constant 0 : index
    %c0_37 = arith.constant 0 : index
    %93 = vector.load %arg8[%c0_36, %c0_37] : memref<1x32xf32, #tpu.memory_space<vmem>>, vector<1x32xf32>
    tpu.vector_store %arg8[%c0_36, %c0_37], %89 {strides = array<i32>} : memref<1x32xf32, #tpu.memory_space<vmem>>, vector<1x32xf32>,
    %c0_38 = arith.constant 0 : index
    %c0_39 = arith.constant 0 : index
    %94 = vector.load %arg7[%c0_38, %c0_39] : memref<1x32xf32, #tpu.memory_space<vmem>>, vector<1x32xf32>
    tpu.vector_store %arg7[%c0_38, %c0_39], %89 {strides = array<i32>} : memref<1x32xf32, #tpu.memory_space<vmem>>, vector<1x32xf32>,
    return
  }
  func.func @transform_0(%arg0: i32) -> (i32, i32) {
    %c0_i32 = arith.constant 0 : i32
    %c0_i32_0 = arith.constant 0 : i32
    return %arg0, %c0_i32 : i32, i32
  }
  func.func @transform_1(%arg0: i32) -> (i32, i32) {
    %c0_i32 = arith.constant 0 : i32
    %c0_i32_0 = arith.constant 0 : i32
    %c0_i32_1 = arith.constant 0 : i32
    return %c0_i32, %c0_i32_0 : i32, i32
  }
  func.func @transform_2(%arg0: i32) -> (i32, i32) {
    %c0_i32 = arith.constant 0 : i32
    %c0_i32_0 = arith.constant 0 : i32
    %c0_i32_1 = arith.constant 0 : i32
    return %c0_i32, %c0_i32_0 : i32, i32
  }
  func.func @transform_3(%arg0: i32) -> (i32, i32) {
    %c0_i32 = arith.constant 0 : i32
    %c0_i32_0 = arith.constant 0 : i32
    %c0_i32_1 = arith.constant 0 : i32
    return %c0_i32, %c0_i32_0 : i32, i32
  }
  func.func @transform_4(%arg0: i32) -> (i32, i32) {
    %c0_i32 = arith.constant 0 : i32
    %c0_i32_0 = arith.constant 0 : i32
    %c0_i32_1 = arith.constant 0 : i32
    return %c0_i32, %c0_i32_0 : i32, i32
  }
  func.func @transform_5(%arg0: i32) -> (i32, i32) {
    %c0_i32 = arith.constant 0 : i32
    %c0_i32_0 = arith.constant 0 : i32
    return %arg0, %c0_i32 : i32, i32
  }
  func.func @transform_6(%arg0: i32) -> (i32, i32) {
    %c0_i32 = arith.constant 0 : i32
    %c0_i32_0 = arith.constant 0 : i32
    %c0_i32_1 = arith.constant 0 : i32
    return %c0_i32, %c0_i32_0 : i32, i32
  }
}

</mosaic_0001>

<llo_original>
// kernel: tpu_custom_call.1
$region0: #{tpu_custom_call.1}
  #allocation0 [shape = 'u32[]', space=smem, size = 0x4, offset = 0x4, fixed_abs, tag = 'smem constant byte address 0x4 - core index']
  #allocation1 [shape = 'u32[144,128]{1,0:T(1,128)}', space=vmem, size = 0x12000, scoped, tag = 'internal scratch']
  #allocation2 [shape = 'f32[1,32]{1,0:T(1,128)}', space=vmem, size = 0x200, scoped, tag = 'scratch operand']
  %s0 = inlined_call_operand.vmem [shape: f32[8,2], index: 0, kind: input, shape index: {}]
  %s1 = inlined_call_operand.vmem [shape: f32[1,32], index: 1, kind: input, shape index: {}]
  %s2 = inlined_call_operand.vmem [shape: f32[2,32], index: 2, kind: input, shape index: {}]
  %s3 = inlined_call_operand.hbm [shape: f32[32,32], index: 3, kind: input, shape index: {}]
  %s4 = inlined_call_operand.vmem [shape: f32[1,32], index: 4, kind: input, shape index: {}]
  %s5 = inlined_call_operand.hbm [shape: f32[8,32], index: 5, kind: output, shape index: {0}]
  %s6 = inlined_call_operand.hbm [shape: f32[1,32], index: 6, kind: output, shape index: {1}]
  %7 = xla_tuple %s5, %s6
  %s8 = sld [smem:[#allocation0]]
  $region46: #{tpu_custom_call.1} parent=0
    _
  %s10 = ssub.s32 1, %s8
  %s11 = scalar_select 0, %s10, %s8
  $region1: #{tpu_custom_call.1} parent=0
    #allocation3 [shape = 'u8[16384]{0}', space=vmem, size = 0x4000, scoped, tag = 'input window, operand 3, single buffered']
    #allocation4 [shape = 's32[1]{0}', space=sflag, size = 0x4, scoped, tag = 'scoped memory for tpu_custom_call.1']
    #allocation5 [shape = 's32[1]{0}', space=sflag, size = 0x4, scoped, tag = 'scoped memory for tpu_custom_call.1']
    #allocation6 [shape = 'u8[4096]{0}', space=vmem, size = 0x1000, scoped, tag = 'output window, operand 0, single buffered']
    #allocation7 [shape = 'u8[512]{0}', space=vmem, size = 0x400, scoped, tag = 'output window, operand 1, single buffered']
    #allocation8 [shape = 's32[1]{0}', space=sflag, size = 0x4, scoped, tag = 'scoped memory for tpu_custom_call.1']
    %12 = vsyncpa [#allocation4], 0
    %13 = vsyncpa [#allocation5], 0
    %14 = vsyncpa [#allocation8], 0
    // Predicated region
    $region2: #{tpu_custom_call.1} parent=1 // pred_check
      _
    $region3: #{tpu_custom_call.1} parent=1 // pred_check_branch
      %16 = sbr.rel (0) target = $region5
    $region4: #{tpu_custom_call.1} parent=1 // pred_region
      _
    $region5: #{tpu_custom_call.1} parent=1 // pred_fallthru
      _
    // Predicated region
    $region6: #{tpu_custom_call.1} parent=1 // pred_check
      _
    $region7: #{tpu_custom_call.1} parent=1 // pred_check_branch
      %18 = sbr.rel (0) target = $region9
    $region8: #{tpu_custom_call.1} parent=1 // pred_region
      _
    $region9: #{tpu_custom_call.1} parent=1 // pred_fallthru
      _
    // Predicated region
    $region10: #{tpu_custom_call.1} parent=1 // pred_check
      _
    $region11: #{tpu_custom_call.1} parent=1 // pred_check_branch
      %20 = sbr.rel (0) target = $region13
    $region12: #{tpu_custom_call.1} parent=1 // pred_region
      _
    $region13: #{tpu_custom_call.1} parent=1 // pred_fallthru
      _
    // Predicated region
    $region14: #{tpu_custom_call.1} parent=1 // pred_check
      _
    $region15: #{tpu_custom_call.1} parent=1 // pred_check_branch
      %22 = sbr.rel (0) target = $region17
    $region16: #{tpu_custom_call.1} parent=1 // pred_region
      %s24 = ssub.s32 512, 512
      %25 = vsyncadd [#allocation4], %s24
      %s26 = sshll.u32 [#allocation3], 4
      %s27 = int_to_ptr.vmem [resolvable:$true] %s26
      %32 = dma.hbm_to_vmem [thread:$0]  %s3, 512, %s27, [#allocation4], 128, 128, 8
    $region17: #{tpu_custom_call.1} parent=1 // pred_fallthru
      _
    // Predicated region
    $region18: #{tpu_custom_call.1} parent=1 // pred_check
      _
    $region19: #{tpu_custom_call.1} parent=1 // pred_check_branch
      %34 = sbr.rel (0) target = $region21
    $region20: #{tpu_custom_call.1} parent=1 // pred_region
      _
    $region21: #{tpu_custom_call.1} parent=1 // pred_fallthru
      _
    // Predicated region
    $region22: #{tpu_custom_call.1} parent=1 // pred_check
      _
    $region23: #{tpu_custom_call.1} parent=1 // pred_check_branch
      %36 = sbr.rel (0) target = $region25
    $region24: #{tpu_custom_call.1} parent=1 // pred_region
      %37 = dma.done [#allocation4], 512
    $region25: #{tpu_custom_call.1} parent=1 // pred_fallthru
      _
    %s38 = smul.u32 0, 8
    %p39 = scmp.eq.s32.totalorder 0, 0
    // Predicated region
    $region26: #{tpu_custom_call.1} parent=1 // pred_check
      %p40 = pneg %p39
    $region27: #{tpu_custom_call.1} parent=1 // pred_check_branch
      %42 = sbr.rel (%p40) target = $region29
    $region28: #{tpu_custom_call.1} parent=1 // pred_region
      %v43 = vld [vmem:[%s1] sm:$0x1]
      %vm44 = vcmask 253952
      %45 = vst.msk [vmem:[#allocation2] sm:$0x1] %vm44, %v43
    $region29: #{tpu_custom_call.1} parent=1 // pred_fallthru
      _
    %v46 = vld [vmem:[%s4] sm:$0x1]
    %v48 = vlaneseq
    %v49 = vshrl.u32 %v48, 7
    %v50 = vsub.s32 0, %v49
    %v51 = vrot.slane %v46, %v50
    %v53 = vld [vmem:[%s0] sm:$0xff]
    %v54 = vld [vmem:[%s2] sm:$0x1]
    %56 = vset.pattern.permute.xlu0 0
    %57 = vperm.xlu0 %56, %v53
    %v58 = vpop.permute.xlu0 %57
    %v60 = vlaneseq
    %v61 = vshrl.u32 %v60, 7
    %v62 = vsub.s32 0, %v61
    %v63 = vrot.slane %v54, %v62
    %v64 = vmul.f32 %v58, %v63
    %v65 = vadd.f32 %v51, %v64
    %v66 = vld [vmem:[%s2 + $0x1] sm:$0x1]
    %67 = vset.pattern.permute.xlu0 1
    %68 = vperm.xlu0 %67, %v53
    %v69 = vpop.permute.xlu0 %68
    %v71 = vlaneseq
    %v72 = vshrl.u32 %v71, 7
    %v73 = vsub.s32 0, %v72
    %v74 = vrot.slane %v66, %v73
    %v75 = vmul.f32 %v69, %v74
    %v76 = vadd.f32 %v65, %v75
    %vm77 = vcmask 261120
    %78 = vst.msk [vmem:[#allocation6] sm:$0xff] %vm77, %v76
    %v79 = vld [vmem:[#allocation3] sm:$0xff]
    %v80 = vld [vmem:[#allocation3 + $0x8] sm:$0xff]
    %v81 = vld [vmem:[#allocation3 + $0x10] sm:$0xff]
    %v82 = vld [vmem:[#allocation3 + $0x18] sm:$0xff]
    %v83 = vld [vmem:[#allocation2] sm:$0x1]
    %v84 = vld [vmem:[#allocation6] sm:$0xff]
    %v86 = vsel %vm77, %v83, 0
    %88 = vmatprep.subr.mxu0 0.0
    %89 = vmatpush1.msra.mxu0 %v79
    %90 = vmatprep.subr.mxu0 0.0
    %91 = vmatpush1.msra.mxu0 %v80
    %92 = vmatprep.subr.mxu0 0.0
    %93 = vmatpush1.msra.mxu0 %v81
    %94 = vmatprep.subr.mxu0 0.0
    %95 = vmatpush1.msra.mxu0 %v82
    %96 = vmatprep.subr.mxu0 0.0
    %97 = vmatpush1.msra.mxu0 0.0
    %98 = vmatprep.subr.mxu0 0.0
    %99 = vmatpush1.msra.mxu0 0.0
    %100 = vmatprep.subr.mxu0 0.0
    %101 = vmatpush1.msra.mxu0 0.0
    %102 = vmatprep.subr.mxu0 0.0
    %103 = vmatpush1.msra.mxu0 0.0
    %104 = vmatprep.subr.mxu0 0.0
    %105 = vmatpush1.msra.mxu0 0.0
    %106 = vmatprep.subr.mxu0 0.0
    %107 = vmatpush1.msra.mxu0 0.0
    %108 = vmatprep.subr.mxu0 0.0
    %109 = vmatpush1.msra.mxu0 0.0
    %110 = vmatprep.subr.mxu0 0.0
    %111 = vmatpush1.msra.mxu0 0.0
    %112 = vmatprep.subr.mxu0 0.0
    %113 = vmatpush1.msra.mxu0 0.0
    %114 = vmatprep.subr.mxu0 0.0
    %115 = vmatpush1.msra.mxu0 0.0
    %116 = vmatprep.subr.mxu0 0.0
    %117 = vmatpush1.msra.mxu0 0.0
    %118 = vmatprep.subr.mxu0 0.0
    %119 = vmatpush1.msra.mxu0 0.0
    %120 = vmatprep.subr.mxu0 0.0
    %121 = vmatpush1.msra.mxu0 0.0
    %122 = vmatprep.subr.mxu0 0.0
    %123 = vmatpush1.msra.mxu0 0.0
    %124 = vmatprep.subr.mxu0 0.0
    %125 = vmatpush1.msra.mxu0 0.0
    %126 = vmatprep.subr.mxu0 0.0
    %127 = vmatpush1.msra.mxu0 0.0
    %128 = vmatprep.subr.mxu0 0.0
    %129 = vmatpush1.msra.mxu0 0.0
    %130 = vmatprep.subr.mxu0 0.0
    %131 = vmatpush1.msra.mxu0 0.0
    %132 = vmatprep.subr.mxu0 0.0
    %133 = vmatpush1.msra.mxu0 0.0
    %134 = vmatprep.subr.mxu0 0.0
    %135 = vmatpush1.msra.mxu0 0.0
    %136 = vmatprep.subr.mxu0 0.0
    %137 = vmatpush1.msra.mxu0 0.0
    %138 = vmatprep.subr.mxu0 0.0
    %139 = vmatpush1.msra.mxu0 0.0
    %140 = vmatprep.subr.mxu0 0.0
    %141 = vmatpush1.msra.mxu0 0.0
    %142 = vmatprep.subr.mxu0 0.0
    %143 = vmatpush1.msra.mxu0 0.0
    %144 = vmatprep.subr.mxu0 0.0
    %145 = vmatpush1.msra.mxu0 0.0
    %146 = vmatprep.subr.mxu0 0.0
    %147 = vmatpush1.msra.mxu0 0.0
    %148 = vmatprep.subr.mxu0 0.0
    %149 = vmatpush1.msra.mxu0 0.0
    %150 = vmatprep.subr.mxu0 0.0
    %151 = vmatpush1.msra.mxu0 0.0
    %152 = vmatprep.mubr.f32.mxu0 0.0
    %153 = vmatmul.mubr.f32.gmra.mrb[0].mxu0 %v86
    %v154 = vpop.f32.mrb[0].mxu0
    %v155 = vadd.f32 0.0, %v154
    %v156 = vpop.f32.mrb[0].mxu0
    %157 = vdwg.mxu0
    %v158 = vadd.f32 %v84, %v155
    %v159 = vtanh.pop %v158
    %s160 = sadd.s32 %s38, 0
    %p161 = scmp.lt.s32.totalorder %s160, 8
    %s162 = scalar_select %p161, 1, 0
    %v163 = vstv %s162
    %vm164 = vcmp.eq.s32.totalorder %v163, 1
    %v165 = vsel %vm164, %v159, %v83
    %v167 = vsel %vm77, %v165, 0
    %169 = vmatprep.subr.mxu0 0.0
    %170 = vmatpush1.msra.mxu0 %v79
    %171 = vmatprep.subr.mxu0 0.0
    %172 = vmatpush1.msra.mxu0 %v80
    %173 = vmatprep.subr.mxu0 0.0
    %174 = vmatpush1.msra.mxu0 %v81
    %175 = vmatprep.subr.mxu0 0.0
    %176 = vmatpush1.msra.mxu0 %v82
    %177 = vmatprep.subr.mxu0 0.0
    %178 = vmatpush1.msra.mxu0 0.0
    %179 = vmatprep.subr.mxu0 0.0
    %180 = vmatpush1.msra.mxu0 0.0
    %181 = vmatprep.subr.mxu0 0.0
    %182 = vmatpush1.msra.mxu0 0.0
    %183 = vmatprep.subr.mxu0 0.0
    %184 = vmatpush1.msra.mxu0 0.0
    %185 = vmatprep.subr.mxu0 0.0
    %186 = vmatpush1.msra.mxu0 0.0
    %187 = vmatprep.subr.mxu0 0.0
    %188 = vmatpush1.msra.mxu0 0.0
    %189 = vmatprep.subr.mxu0 0.0
    %190 = vmatpush1.msra.mxu0 0.0
    %191 = vmatprep.subr.mxu0 0.0
    %192 = vmatpush1.msra.mxu0 0.0
    %193 = vmatprep.subr.mxu0 0.0
    %194 = vmatpush1.msra.mxu0 0.0
    %195 = vmatprep.subr.mxu0 0.0
    %196 = vmatpush1.msra.mxu0 0.0
    %197 = vmatprep.subr.mxu0 0.0
    %198 = vmatpush1.msra.mxu0 0.0
    %199 = vmatprep.subr.mxu0 0.0
    %200 = vmatpush1.msra.mxu0 0.0
    %201 = vmatprep.subr.mxu0 0.0
    %202 = vmatpush1.msra.mxu0 0.0
    %203 = vmatprep.subr.mxu0 0.0
    %204 = vmatpush1.msra.mxu0 0.0
    %205 = vmatprep.subr.mxu0 0.0
    %206 = vmatpush1.msra.mxu0 0.0
    %207 = vmatprep.subr.mxu0 0.0
    %208 = vmatpush1.msra.mxu0 0.0
    %209 = vmatprep.subr.mxu0 0.0
    %210 = vmatpush1.msra.mxu0 0.0
    %211 = vmatprep.subr.mxu0 0.0
    %212 = vmatpush1.msra.mxu0 0.0
    %213 = vmatprep.subr.mxu0 0.0
    %214 = vmatpush1.msra.mxu0 0.0
    %215 = vmatprep.subr.mxu0 0.0
    %216 = vmatpush1.msra.mxu0 0.0
    %217 = vmatprep.subr.mxu0 0.0
    %218 = vmatpush1.msra.mxu0 0.0
    %219 = vmatprep.subr.mxu0 0.0
    %220 = vmatpush1.msra.mxu0 0.0
    %221 = vmatprep.subr.mxu0 0.0
    %222 = vmatpush1.msra.mxu0 0.0
    %223 = vmatprep.subr.mxu0 0.0
    %224 = vmatpush1.msra.mxu0 0.0
    %225 = vmatprep.subr.mxu0 0.0
    %226 = vmatpush1.msra.mxu0 0.0
    %227 = vmatprep.subr.mxu0 0.0
    %228 = vmatpush1.msra.mxu0 0.0
    %229 = vmatprep.subr.mxu0 0.0
    %230 = vmatpush1.msra.mxu0 0.0
    %231 = vmatprep.subr.mxu0 0.0
    %232 = vmatpush1.msra.mxu0 0.0
    %233 = vmatprep.mubr.f32.mxu0 0.0
    %234 = vmatmul.mubr.f32.gmra.mrb[0].mxu0 %v167
    %v235 = vpop.f32.mrb[0].mxu0
    %v236 = vadd.f32 0.0, %v235
    %v237 = vpop.f32.mrb[0].mxu0
    %238 = vdwg.mxu0
    %v240 = vrot.slane %v236, 7
    %v242 = vadd.f32 %v84, %v240
    %v243 = vtanh.pop %v242
    %s244 = sadd.s32 %s160, 1
    %p245 = scmp.lt.s32.totalorder %s244, 8
    %s246 = scalar_select %p245, 1, 0
    %v247 = vstv %s246
    %vm248 = vcmp.eq.s32.totalorder %v247, 1
    %v249 = vrot.slane %v165, 7
    %v251 = vsel %vm248, %v243, %v249
    %v253 = vrot.slane %v251, 1
    %v254 = vsel %vm77, %v253, 0
    %256 = vmatprep.subr.mxu0 0.0
    %257 = vmatpush1.msra.mxu0 %v79
    %258 = vmatprep.subr.mxu0 0.0
    %259 = vmatpush1.msra.mxu0 %v80
    %260 = vmatprep.subr.mxu0 0.0
    %261 = vmatpush1.msra.mxu0 %v81
    %262 = vmatprep.subr.mxu0 0.0
    %263 = vmatpush1.msra.mxu0 %v82
    %264 = vmatprep.subr.mxu0 0.0
    %265 = vmatpush1.msra.mxu0 0.0
    %266 = vmatprep.subr.mxu0 0.0
    %267 = vmatpush1.msra.mxu0 0.0
    %268 = vmatprep.subr.mxu0 0.0
    %269 = vmatpush1.msra.mxu0 0.0
    %270 = vmatprep.subr.mxu0 0.0
    %271 = vmatpush1.msra.mxu0 0.0
    %272 = vmatprep.subr.mxu0 0.0
    %273 = vmatpush1.msra.mxu0 0.0
    %274 = vmatprep.subr.mxu0 0.0
    %275 = vmatpush1.msra.mxu0 0.0
    %276 = vmatprep.subr.mxu0 0.0
    %277 = vmatpush1.msra.mxu0 0.0
    %278 = vmatprep.subr.mxu0 0.0
    %279 = vmatpush1.msra.mxu0 0.0
    %280 = vmatprep.subr.mxu0 0.0
    %281 = vmatpush1.msra.mxu0 0.0
    %282 = vmatprep.subr.mxu0 0.0
    %283 = vmatpush1.msra.mxu0 0.0
    %284 = vmatprep.subr.mxu0 0.0
    %285 = vmatpush1.msra.mxu0 0.0
    %286 = vmatprep.subr.mxu0 0.0
    %287 = vmatpush1.msra.mxu0 0.0
    %288 = vmatprep.subr.mxu0 0.0
    %289 = vmatpush1.msra.mxu0 0.0
    %290 = vmatprep.subr.mxu0 0.0
    %291 = vmatpush1.msra.mxu0 0.0
    %292 = vmatprep.subr.mxu0 0.0
    %293 = vmatpush1.msra.mxu0 0.0
    %294 = vmatprep.subr.mxu0 0.0
    %295 = vmatpush1.msra.mxu0 0.0
    %296 = vmatprep.subr.mxu0 0.0
    %297 = vmatpush1.msra.mxu0 0.0
    %298 = vmatprep.subr.mxu0 0.0
    %299 = vmatpush1.msra.mxu0 0.0
    %300 = vmatprep.subr.mxu0 0.0
    %301 = vmatpush1.msra.mxu0 0.0
    %302 = vmatprep.subr.mxu0 0.0
    %303 = vmatpush1.msra.mxu0 0.0
    %304 = vmatprep.subr.mxu0 0.0
    %305 = vmatpush1.msra.mxu0 0.0
    %306 = vmatprep.subr.mxu0 0.0
    %307 = vmatpush1.msra.mxu0 0.0
    %308 = vmatprep.subr.mxu0 0.0
    %309 = vmatpush1.msra.mxu0 0.0
    %310 = vmatprep.subr.mxu0 0.0
    %311 = vmatpush1.msra.mxu0 0.0
    %312 = vmatprep.subr.mxu0 0.0
    %313 = vmatpush1.msra.mxu0 0.0
    %314 = vmatprep.subr.mxu0 0.0
    %315 = vmatpush1.msra.mxu0 0.0
    %316 = vmatprep.subr.mxu0 0.0
    %317 = vmatpush1.msra.mxu0 0.0
    %318 = vmatprep.subr.mxu0 0.0
    %319 = vmatpush1.msra.mxu0 0.0
    %320 = vmatprep.mubr.f32.mxu0 0.0
    %321 = vmatmul.mubr.f32.gmra.mrb[0].mxu0 %v254
    %v322 = vpop.f32.mrb[0].mxu0
    %v323 = vadd.f32 0.0, %v322
    %v324 = vpop.f32.mrb[0].mxu0
    %325 = vdwg.mxu0
    %v327 = vrot.slane %v323, 6
    %v329 = vadd.f32 %v84, %v327
    %v330 = vtanh.pop %v329
    %s331 = sadd.s32 %s160, 2
    %p332 = scmp.lt.s32.totalorder %s331, 8
    %s333 = scalar_select %p332, 1, 0
    %v334 = vstv %s333
    %vm335 = vcmp.eq.s32.totalorder %v334, 1
    %v336 = vrot.slane %v251, 7
    %v338 = vsel %vm335, %v330, %v336
    %v340 = vrot.slane %v338, 2
    %v341 = vsel %vm77, %v340, 0
    %343 = vmatprep.subr.mxu0 0.0
    %344 = vmatpush1.msra.mxu0 %v79
    %345 = vmatprep.subr.mxu0 0.0
    %346 = vmatpush1.msra.mxu0 %v80
    %347 = vmatprep.subr.mxu0 0.0
    %348 = vmatpush1.msra.mxu0 %v81
    %349 = vmatprep.subr.mxu0 0.0
    %350 = vmatpush1.msra.mxu0 %v82
    %351 = vmatprep.subr.mxu0 0.0
    %352 = vmatpush1.msra.mxu0 0.0
    %353 = vmatprep.subr.mxu0 0.0
    %354 = vmatpush1.msra.mxu0 0.0
    %355 = vmatprep.subr.mxu0 0.0
    %356 = vmatpush1.msra.mxu0 0.0
    %357 = vmatprep.subr.mxu0 0.0
    %358 = vmatpush1.msra.mxu0 0.0
    %359 = vmatprep.subr.mxu0 0.0
    %360 = vmatpush1.msra.mxu0 0.0
    %361 = vmatprep.subr.mxu0 0.0
    %362 = vmatpush1.msra.mxu0 0.0
    %363 = vmatprep.subr.mxu0 0.0
    %364 = vmatpush1.msra.mxu0 0.0
    %365 = vmatprep.subr.mxu0 0.0
    %366 = vmatpush1.msra.mxu0 0.0
    %367 = vmatprep.subr.mxu0 0.0
    %368 = vmatpush1.msra.mxu0 0.0
    %369 = vmatprep.subr.mxu0 0.0
    %370 = vmatpush1.msra.mxu0 0.0
    %371 = vmatprep.subr.mxu0 0.0
    %372 = vmatpush1.msra.mxu0 0.0
    %373 = vmatprep.subr.mxu0 0.0
    %374 = vmatpush1.msra.mxu0 0.0
    %375 = vmatprep.subr.mxu0 0.0
    %376 = vmatpush1.msra.mxu0 0.0
    %377 = vmatprep.subr.mxu0 0.0
    %378 = vmatpush1.msra.mxu0 0.0
    %379 = vmatprep.subr.mxu0 0.0
    %380 = vmatpush1.msra.mxu0 0.0
    %381 = vmatprep.subr.mxu0 0.0
    %382 = vmatpush1.msra.mxu0 0.0
    %383 = vmatprep.subr.mxu0 0.0
    %384 = vmatpush1.msra.mxu0 0.0
    %385 = vmatprep.subr.mxu0 0.0
    %386 = vmatpush1.msra.mxu0 0.0
    %387 = vmatprep.subr.mxu0 0.0
    %388 = vmatpush1.msra.mxu0 0.0
    %389 = vmatprep.subr.mxu0 0.0
    %390 = vmatpush1.msra.mxu0 0.0
    %391 = vmatprep.subr.mxu0 0.0
    %392 = vmatpush1.msra.mxu0 0.0
    %393 = vmatprep.subr.mxu0 0.0
    %394 = vmatpush1.msra.mxu0 0.0
    %395 = vmatprep.subr.mxu0 0.0
    %396 = vmatpush1.msra.mxu0 0.0
    %397 = vmatprep.subr.mxu0 0.0
    %398 = vmatpush1.msra.mxu0 0.0
    %399 = vmatprep.subr.mxu0 0.0
    %400 = vmatpush1.msra.mxu0 0.0
    %401 = vmatprep.subr.mxu0 0.0
    %402 = vmatpush1.msra.mxu0 0.0
    %403 = vmatprep.subr.mxu0 0.0
    %404 = vmatpush1.msra.mxu0 0.0
    %405 = vmatprep.subr.mxu0 0.0
    %406 = vmatpush1.msra.mxu0 0.0
    %407 = vmatprep.mubr.f32.mxu0 0.0
    %408 = vmatmul.mubr.f32.gmra.mrb[0].mxu0 %v341
    %v409 = vpop.f32.mrb[0].mxu0
    %v410 = vadd.f32 0.0, %v409
    %v411 = vpop.f32.mrb[0].mxu0
    %412 = vdwg.mxu0
    %v414 = vrot.slane %v410, 5
    %v416 = vadd.f32 %v84, %v414
    %v417 = vtanh.pop %v416
    %s418 = sadd.s32 %s160, 3
    %p419 = scmp.lt.s32.totalorder %s418, 8
    %s420 = scalar_select %p419, 1, 0
    %v421 = vstv %s420
    %vm422 = vcmp.eq.s32.totalorder %v421, 1
    %v423 = vrot.slane %v338, 7
    %v425 = vsel %vm422, %v417, %v423
    %v427 = vrot.slane %v425, 3
    %v428 = vsel %vm77, %v427, 0
    %430 = vmatprep.subr.mxu0 0.0
    %431 = vmatpush1.msra.mxu0 %v79
    %432 = vmatprep.subr.mxu0 0.0
    %433 = vmatpush1.msra.mxu0 %v80
    %434 = vmatprep.subr.mxu0 0.0
    %435 = vmatpush1.msra.mxu0 %v81
    %436 = vmatprep.subr.mxu0 0.0
    %437 = vmatpush1.msra.mxu0 %v82
    %438 = vmatprep.subr.mxu0 0.0
    %439 = vmatpush1.msra.mxu0 0.0
    %440 = vmatprep.subr.mxu0 0.0
    %441 = vmatpush1.msra.mxu0 0.0
    %442 = vmatprep.subr.mxu0 0.0
    %443 = vmatpush1.msra.mxu0 0.0
    %444 = vmatprep.subr.mxu0 0.0
    %445 = vmatpush1.msra.mxu0 0.0
    %446 = vmatprep.subr.mxu0 0.0
    %447 = vmatpush1.msra.mxu0 0.0
    %448 = vmatprep.subr.mxu0 0.0
    %449 = vmatpush1.msra.mxu0 0.0
    %450 = vmatprep.subr.mxu0 0.0
    %451 = vmatpush1.msra.mxu0 0.0
    %452 = vmatprep.subr.mxu0 0.0
    %453 = vmatpush1.msra.mxu0 0.0
    %454 = vmatprep.subr.mxu0 0.0
    %455 = vmatpush1.msra.mxu0 0.0
    %456 = vmatprep.subr.mxu0 0.0
    %457 = vmatpush1.msra.mxu0 0.0
    %458 = vmatprep.subr.mxu0 0.0
    %459 = vmatpush1.msra.mxu0 0.0
    %460 = vmatprep.subr.mxu0 0.0
    %461 = vmatpush1.msra.mxu0 0.0
    %462 = vmatprep.subr.mxu0 0.0
    %463 = vmatpush1.msra.mxu0 0.0
    %464 = vmatprep.subr.mxu0 0.0
    %465 = vmatpush1.msra.mxu0 0.0
    %466 = vmatprep.subr.mxu0 0.0
    %467 = vmatpush1.msra.mxu0 0.0
    %468 = vmatprep.subr.mxu0 0.0
    %469 = vmatpush1.msra.mxu0 0.0
    %470 = vmatprep.subr.mxu0 0.0
    %471 = vmatpush1.msra.mxu0 0.0
    %472 = vmatprep.subr.mxu0 0.0
    %473 = vmatpush1.msra.mxu0 0.0
    %474 = vmatprep.subr.mxu0 0.0
    %475 = vmatpush1.msra.mxu0 0.0
    %476 = vmatprep.subr.mxu0 0.0
    %477 = vmatpush1.msra.mxu0 0.0
    %478 = vmatprep.subr.mxu0 0.0
    %479 = vmatpush1.msra.mxu0 0.0
    %480 = vmatprep.subr.mxu0 0.0
    %481 = vmatpush1.msra.mxu0 0.0
    %482 = vmatprep.subr.mxu0 0.0
    %483 = vmatpush1.msra.mxu0 0.0
    %484 = vmatprep.subr.mxu0 0.0
    %485 = vmatpush1.msra.mxu0 0.0
    %486 = vmatprep.subr.mxu0 0.0
    %487 = vmatpush1.msra.mxu0 0.0
    %488 = vmatprep.subr.mxu0 0.0
    %489 = vmatpush1.msra.mxu0 0.0
    %490 = vmatprep.subr.mxu0 0.0
    %491 = vmatpush1.msra.mxu0 0.0
    %492 = vmatprep.subr.mxu0 0.0
    %493 = vmatpush1.msra.mxu0 0.0
    %494 = vmatprep.mubr.f32.mxu0 0.0
    %495 = vmatmul.mubr.f32.gmra.mrb[0].mxu0 %v428
    %v496 = vpop.f32.mrb[0].mxu0
    %v497 = vadd.f32 0.0, %v496
    %v498 = vpop.f32.mrb[0].mxu0
    %499 = vdwg.mxu0
    %v501 = vrot.slane %v497, 4
    %v503 = vadd.f32 %v84, %v501
    %v504 = vtanh.pop %v503
    %s505 = sadd.s32 %s160, 4
    %p506 = scmp.lt.s32.totalorder %s505, 8
    %s507 = scalar_select %p506, 1, 0
    %v508 = vstv %s507
    %vm509 = vcmp.eq.s32.totalorder %v508, 1
    %v510 = vrot.slane %v425, 7
    %v512 = vsel %vm509, %v504, %v510
    %v514 = vrot.slane %v512, 4
    %v515 = vsel %vm77, %v514, 0
    %517 = vmatprep.subr.mxu0 0.0
    %518 = vmatpush1.msra.mxu0 %v79
    %519 = vmatprep.subr.mxu0 0.0
    %520 = vmatpush1.msra.mxu0 %v80
    %521 = vmatprep.subr.mxu0 0.0
    %522 = vmatpush1.msra.mxu0 %v81
    %523 = vmatprep.subr.mxu0 0.0
    %524 = vmatpush1.msra.mxu0 %v82
    %525 = vmatprep.subr.mxu0 0.0
    %526 = vmatpush1.msra.mxu0 0.0
    %527 = vmatprep.subr.mxu0 0.0
    %528 = vmatpush1.msra.mxu0 0.0
    %529 = vmatprep.subr.mxu0 0.0
    %530 = vmatpush1.msra.mxu0 0.0
    %531 = vmatprep.subr.mxu0 0.0
    %532 = vmatpush1.msra.mxu0 0.0
    %533 = vmatprep.subr.mxu0 0.0
    %534 = vmatpush1.msra.mxu0 0.0
    %535 = vmatprep.subr.mxu0 0.0
    %536 = vmatpush1.msra.mxu0 0.0
    %537 = vmatprep.subr.mxu0 0.0
    %538 = vmatpush1.msra.mxu0 0.0
    %539 = vmatprep.subr.mxu0 0.0
    %540 = vmatpush1.msra.mxu0 0.0
    %541 = vmatprep.subr.mxu0 0.0
    %542 = vmatpush1.msra.mxu0 0.0
    %543 = vmatprep.subr.mxu0 0.0
    %544 = vmatpush1.msra.mxu0 0.0
    %545 = vmatprep.subr.mxu0 0.0
    %546 = vmatpush1.msra.mxu0 0.0
    %547 = vmatprep.subr.mxu0 0.0
    %548 = vmatpush1.msra.mxu0 0.0
    %549 = vmatprep.subr.mxu0 0.0
    %550 = vmatpush1.msra.mxu0 0.0
    %551 = vmatprep.subr.mxu0 0.0
    %552 = vmatpush1.msra.mxu0 0.0
    %553 = vmatprep.subr.mxu0 0.0
    %554 = vmatpush1.msra.mxu0 0.0
    %555 = vmatprep.subr.mxu0 0.0
    %556 = vmatpush1.msra.mxu0 0.0
    %557 = vmatprep.subr.mxu0 0.0
    %558 = vmatpush1.msra.mxu0 0.0
    %559 = vmatprep.subr.mxu0 0.0
    %560 = vmatpush1.msra.mxu0 0.0
    %561 = vmatprep.subr.mxu0 0.0
    %562 = vmatpush1.msra.mxu0 0.0
    %563 = vmatprep.subr.mxu0 0.0
    %564 = vmatpush1.msra.mxu0 0.0
    %565 = vmatprep.subr.mxu0 0.0
    %566 = vmatpush1.msra.mxu0 0.0
    %567 = vmatprep.subr.mxu0 0.0
    %568 = vmatpush1.msra.mxu0 0.0
    %569 = vmatprep.subr.mxu0 0.0
    %570 = vmatpush1.msra.mxu0 0.0
    %571 = vmatprep.subr.mxu0 0.0
    %572 = vmatpush1.msra.mxu0 0.0
    %573 = vmatprep.subr.mxu0 0.0
    %574 = vmatpush1.msra.mxu0 0.0
    %575 = vmatprep.subr.mxu0 0.0
    %576 = vmatpush1.msra.mxu0 0.0
    %577 = vmatprep.subr.mxu0 0.0
    %578 = vmatpush1.msra.mxu0 0.0
    %579 = vmatprep.subr.mxu0 0.0
    %580 = vmatpush1.msra.mxu0 0.0
    %581 = vmatprep.mubr.f32.mxu0 0.0
    %582 = vmatmul.mubr.f32.gmra.mrb[0].mxu0 %v515
    %v583 = vpop.f32.mrb[0].mxu0
    %v584 = vadd.f32 0.0, %v583
    %v585 = vpop.f32.mrb[0].mxu0
    %586 = vdwg.mxu0
    %v588 = vrot.slane %v584, 3
    %v590 = vadd.f32 %v84, %v588
    %v591 = vtanh.pop %v590
    %s592 = sadd.s32 %s160, 5
    %p593 = scmp.lt.s32.totalorder %s592, 8
    %s594 = scalar_select %p593, 1, 0
    %v595 = vstv %s594
    %vm596 = vcmp.eq.s32.totalorder %v595, 1
    %v597 = vrot.slane %v512, 7
    %v599 = vsel %vm596, %v591, %v597
    %v601 = vrot.slane %v599, 5
    %v602 = vsel %vm77, %v601, 0
    %604 = vmatprep.subr.mxu0 0.0
    %605 = vmatpush1.msra.mxu0 %v79
    %606 = vmatprep.subr.mxu0 0.0
    %607 = vmatpush1.msra.mxu0 %v80
    %608 = vmatprep.subr.mxu0 0.0
    %609 = vmatpush1.msra.mxu0 %v81
    %610 = vmatprep.subr.mxu0 0.0
    %611 = vmatpush1.msra.mxu0 %v82
    %612 = vmatprep.subr.mxu0 0.0
    %613 = vmatpush1.msra.mxu0 0.0
    %614 = vmatprep.subr.mxu0 0.0
    %615 = vmatpush1.msra.mxu0 0.0
    %616 = vmatprep.subr.mxu0 0.0
    %617 = vmatpush1.msra.mxu0 0.0
    %618 = vmatprep.subr.mxu0 0.0
    %619 = vmatpush1.msra.mxu0 0.0
    %620 = vmatprep.subr.mxu0 0.0
    %621 = vmatpush1.msra.mxu0 0.0
    %622 = vmatprep.subr.mxu0 0.0
    %623 = vmatpush1.msra.mxu0 0.0
    %624 = vmatprep.subr.mxu0 0.0
    %625 = vmatpush1.msra.mxu0 0.0
    %626 = vmatprep.subr.mxu0 0.0
    %627 = vmatpush1.msra.mxu0 0.0
    %628 = vmatprep.subr.mxu0 0.0
    %629 = vmatpush1.msra.mxu0 0.0
    %630 = vmatprep.subr.mxu0 0.0
    %631 = vmatpush1.msra.mxu0 0.0
    %632 = vmatprep.subr.mxu0 0.0
    %633 = vmatpush1.msra.mxu0 0.0
    %634 = vmatprep.subr.mxu0 0.0
    %635 = vmatpush1.msra.mxu0 0.0
    %636 = vmatprep.subr.mxu0 0.0
    %637 = vmatpush1.msra.mxu0 0.0
    %638 = vmatprep.subr.mxu0 0.0
    %639 = vmatpush1.msra.mxu0 0.0
    %640 = vmatprep.subr.mxu0 0.0
    %641 = vmatpush1.msra.mxu0 0.0
    %642 = vmatprep.subr.mxu0 0.0
    %643 = vmatpush1.msra.mxu0 0.0
    %644 = vmatprep.subr.mxu0 0.0
    %645 = vmatpush1.msra.mxu0 0.0
    %646 = vmatprep.subr.mxu0 0.0
    %647 = vmatpush1.msra.mxu0 0.0
    %648 = vmatprep.subr.mxu0 0.0
    %649 = vmatpush1.msra.mxu0 0.0
    %650 = vmatprep.subr.mxu0 0.0
    %651 = vmatpush1.msra.mxu0 0.0
    %652 = vmatprep.subr.mxu0 0.0
    %653 = vmatpush1.msra.mxu0 0.0
    %654 = vmatprep.subr.mxu0 0.0
    %655 = vmatpush1.msra.mxu0 0.0
    %656 = vmatprep.subr.mxu0 0.0
    %657 = vmatpush1.msra.mxu0 0.0
    %658 = vmatprep.subr.mxu0 0.0
    %659 = vmatpush1.msra.mxu0 0.0
    %660 = vmatprep.subr.mxu0 0.0
    %661 = vmatpush1.msra.mxu0 0.0
    %662 = vmatprep.subr.mxu0 0.0
    %663 = vmatpush1.msra.mxu0 0.0
    %664 = vmatprep.subr.mxu0 0.0
    %665 = vmatpush1.msra.mxu0 0.0
    %666 = vmatprep.subr.mxu0 0.0
    %667 = vmatpush1.msra.mxu0 0.0
    %668 = vmatprep.mubr.f32.mxu0 0.0
    %669 = vmatmul.mubr.f32.gmra.mrb[0].mxu0 %v602
    %v670 = vpop.f32.mrb[0].mxu0
    %v671 = vadd.f32 0.0, %v670
    %v672 = vpop.f32.mrb[0].mxu0
    %673 = vdwg.mxu0
    %v675 = vrot.slane %v671, 2
    %v677 = vadd.f32 %v84, %v675
    %v678 = vtanh.pop %v677
    %s679 = sadd.s32 %s160, 6
    %p680 = scmp.lt.s32.totalorder %s679, 8
    %s681 = scalar_select %p680, 1, 0
    %v682 = vstv %s681
    %vm683 = vcmp.eq.s32.totalorder %v682, 1
    %v684 = vrot.slane %v599, 7
    %v686 = vsel %vm683, %v678, %v684
    %v688 = vrot.slane %v686, 6
    %v689 = vsel %vm77, %v688, 0
    %691 = vmatprep.subr.mxu0 0.0
    %692 = vmatpush1.msra.mxu0 %v79
    %693 = vmatprep.subr.mxu0 0.0
    %694 = vmatpush1.msra.mxu0 %v80
    %695 = vmatprep.subr.mxu0 0.0
    %696 = vmatpush1.msra.mxu0 %v81
    %697 = vmatprep.subr.mxu0 0.0
    %698 = vmatpush1.msra.mxu0 %v82
    %699 = vmatprep.subr.mxu0 0.0
    %700 = vmatpush1.msra.mxu0 0.0
    %701 = vmatprep.subr.mxu0 0.0
    %702 = vmatpush1.msra.mxu0 0.0
    %703 = vmatprep.subr.mxu0 0.0
    %704 = vmatpush1.msra.mxu0 0.0
    %705 = vmatprep.subr.mxu0 0.0
    %706 = vmatpush1.msra.mxu0 0.0
    %707 = vmatprep.subr.mxu0 0.0
    %708 = vmatpush1.msra.mxu0 0.0
    %709 = vmatprep.subr.mxu0 0.0
    %710 = vmatpush1.msra.mxu0 0.0
    %711 = vmatprep.subr.mxu0 0.0
    %712 = vmatpush1.msra.mxu0 0.0
    %713 = vmatprep.subr.mxu0 0.0
    %714 = vmatpush1.msra.mxu0 0.0
    %715 = vmatprep.subr.mxu0 0.0
    %716 = vmatpush1.msra.mxu0 0.0
    %717 = vmatprep.subr.mxu0 0.0
    %718 = vmatpush1.msra.mxu0 0.0
    %719 = vmatprep.subr.mxu0 0.0
    %720 = vmatpush1.msra.mxu0 0.0
    %721 = vmatprep.subr.mxu0 0.0
    %722 = vmatpush1.msra.mxu0 0.0
    %723 = vmatprep.subr.mxu0 0.0
    %724 = vmatpush1.msra.mxu0 0.0
    %725 = vmatprep.subr.mxu0 0.0
    %726 = vmatpush1.msra.mxu0 0.0
    %727 = vmatprep.subr.mxu0 0.0
    %728 = vmatpush1.msra.mxu0 0.0
    %729 = vmatprep.subr.mxu0 0.0
    %730 = vmatpush1.msra.mxu0 0.0
    %731 = vmatprep.subr.mxu0 0.0
    %732 = vmatpush1.msra.mxu0 0.0
    %733 = vmatprep.subr.mxu0 0.0
    %734 = vmatpush1.msra.mxu0 0.0
    %735 = vmatprep.subr.mxu0 0.0
    %736 = vmatpush1.msra.mxu0 0.0
    %737 = vmatprep.subr.mxu0 0.0
    %738 = vmatpush1.msra.mxu0 0.0
    %739 = vmatprep.subr.mxu0 0.0
    %740 = vmatpush1.msra.mxu0 0.0
    %741 = vmatprep.subr.mxu0 0.0
    %742 = vmatpush1.msra.mxu0 0.0
    %743 = vmatprep.subr.mxu0 0.0
    %744 = vmatpush1.msra.mxu0 0.0
    %745 = vmatprep.subr.mxu0 0.0
    %746 = vmatpush1.msra.mxu0 0.0
    %747 = vmatprep.subr.mxu0 0.0
    %748 = vmatpush1.msra.mxu0 0.0
    %749 = vmatprep.subr.mxu0 0.0
    %750 = vmatpush1.msra.mxu0 0.0
    %751 = vmatprep.subr.mxu0 0.0
    %752 = vmatpush1.msra.mxu0 0.0
    %753 = vmatprep.subr.mxu0 0.0
    %754 = vmatpush1.msra.mxu0 0.0
    %755 = vmatprep.mubr.f32.mxu0 0.0
    %756 = vmatmul.mubr.f32.gmra.mrb[0].mxu0 %v689
    %v757 = vpop.f32.mrb[0].mxu0
    %v758 = vadd.f32 0.0, %v757
    %v759 = vpop.f32.mrb[0].mxu0
    %760 = vdwg.mxu0
    %v762 = vrot.slane %v758, 1
    %v764 = vadd.f32 %v84, %v762
    %v765 = vtanh.pop %v764
    %s766 = sadd.s32 %s160, 7
    %p767 = scmp.lt.s32.totalorder %s766, 8
    %s768 = scalar_select %p767, 1, 0
    %v769 = vstv %s768
    %vm770 = vcmp.eq.s32.totalorder %v769, 1
    %v771 = vrot.slane %v686, 7
    %v773 = vsel %vm770, %v765, %v771
    %vm774 = vcmask 1040384
    %v775 = vsel %vm774, %v165, %v251
    %vm776 = vcmask 1041408
    %v777 = vsel %vm776, %v775, %v338
    %vm778 = vcmask 1042432
    %v779 = vsel %vm778, %v777, %v425
    %vm780 = vcmask 1043456
    %v781 = vsel %vm780, %v779, %v512
    %vm782 = vcmask 1044480
    %v783 = vsel %vm782, %v781, %v599
    %vm784 = vcmask 1045504
    %v785 = vsel %vm784, %v783, %v686
    %vm786 = vcmask 1046528
    %v787 = vsel %vm786, %v785, %v773
    %788 = vst.msk [vmem:[#allocation6] sm:$0xff] %vm77, %v787
    %vm789 = vcmask 261127
    %790 = vst.msk [vmem:[#allocation2 - $0x7] sm:$0x80] %vm789, %v773
    %791 = vst.msk [vmem:[#allocation7 - $0x7] sm:$0x80] %vm789, %v773
    // Predicated region
    $region30: #{tpu_custom_call.1} parent=1 // pred_check
      _
    $region31: #{tpu_custom_call.1} parent=1 // pred_check_branch
      %793 = sbr.rel (0) target = $region33
    $region32: #{tpu_custom_call.1} parent=1 // pred_region
      %s795 = ssub.s32 128, 128
      %796 = vsyncadd [#allocation5], %s795
      %s798 = sshll.u32 [#allocation6], 4
      %s799 = int_to_ptr.vmem [resolvable:$true] %s798
      %801 = dma.vmem_to_hbm [thread:$0]  %s799, 128, %s5, [#allocation5]
    $region33: #{tpu_custom_call.1} parent=1 // pred_fallthru
      _
    // Predicated region
    $region34: #{tpu_custom_call.1} parent=1 // pred_check
      _
    $region35: #{tpu_custom_call.1} parent=1 // pred_check_branch
      %803 = sbr.rel (0) target = $region37
    $region36: #{tpu_custom_call.1} parent=1 // pred_region
      %s805 = ssub.s32 16, 16
      %806 = vsyncadd [#allocation8], %s805
      %s808 = sshll.u32 [#allocation7], 4
      %s809 = int_to_ptr.vmem [resolvable:$true] %s808
      %811 = dma.vmem_to_hbm [thread:$0]  %s809, 16, %s6, [#allocation8]
    $region37: #{tpu_custom_call.1} parent=1 // pred_fallthru
      _
    // Predicated region
    $region38: #{tpu_custom_call.1} parent=1 // pred_check
      _
    $region39: #{tpu_custom_call.1} parent=1 // pred_check_branch
      %813 = sbr.rel (0) target = $region41
    $region40: #{tpu_custom_call.1} parent=1 // pred_region
      %814 = dma.done [#allocation5], 128
    $region41: #{tpu_custom_call.1} parent=1 // pred_fallthru
      _
    // Predicated region
    $region42: #{tpu_custom_call.1} parent=1 // pred_check
      _
    $region43: #{tpu_custom_call.1} parent=1 // pred_check_branch
      %816 = sbr.rel (0) target = $region45
    $region44: #{tpu_custom_call.1} parent=1 // pred_region
      %817 = dma.done [#allocation8], 16
    $region45: #{tpu_custom_call.1} parent=1 // pred_fallthru
      _
    %818 = vsyncpa [#allocation4], 1
    %819 = vsyncpa [#allocation5], 1
    %820 = vsyncpa [#allocation8], 1

</llo_original>
